<compile_context>
chip_gen: v5e
topology: v5e:2x2
jax: 0.10.0
libtpu: 0.0.40
codegen_flags: <defaults>
</compile_context>

<pallas_src>
import numpy as np
import jax
import jax.numpy as jnp
from jax.experimental import pallas as pl
from jax.experimental.pallas import tpu as pltpu

_LRELU_SLOPE = 0.01


# ---------------------------------------------------------------------------
# One-time host-side weight preparation (hoisted out of the forward hot path).
# ---------------------------------------------------------------------------
def _expand_weight_np(w, w_in, stride, pad):
    """PyTorch conv weight (Cout,Cin,kh,kw) -> (kh, w_in*Cin, Wo*Cout).

    out[oy, ox*Cout+co] = sum_i X_i @ wexp[i] with
    X_i[oy, wp*Cin+ci] = x_vpad[stride*oy + i, wp, ci]; x is only vertically
    zero-padded, the horizontal padding is folded into the matrix by dropping
    out-of-range taps.
    """
    w = np.asarray(w, dtype=np.float32)
    Cout, Cin, kh, kw = w.shape
    Wo = (w_in + 2 * pad - kw) // stride + 1
    wt = np.transpose(w, (2, 3, 1, 0))                       # (kh,kw,Cin,Cout)
    wex = np.zeros((kh, w_in, Cin, Wo, Cout), np.float32)
    for ox in range(Wo):
        for j in range(kw):
            wp = stride * ox + j - pad
            if 0 <= wp < w_in:
                wex[:, wp, :, ox, :] = wt[:, j]
    return wex.reshape(kh, w_in * Cin, Wo * Cout)


def _geometry(params, image_size):
    layers = []
    h, cin = image_size, 3
    for (w, _) in params['main']:
        cout, k = int(w.shape[0]), int(w.shape[2])
        s, p = 2, 1
        ho = (h + 2 * p - k) // s + 1
        layers.append(dict(Hin=h, Win=h, Cin=cin, Cout=cout, kh=k, s=s, p=p,
                           Ho=ho, Wo=ho))
        h, cin = ho, cout
    Hf, Cf = h, cin
    kp, pp = int(params['prob'].shape[2]), 1
    ho_p = (Hf + 2 * pp - kp) + 1
    kc = int(params['cond'].shape[2])
    c_dim = int(params['cond'].shape[0])
    assert kc == Hf, "cond conv kernel must cover the whole final feature map"
    ro = ho_p * ho_p
    headw = 128 * ((ro + c_dim + 127) // 128)        # lane-dense output width
    return dict(layers=layers, Hf=Hf, Cf=Cf, kp=kp, pp=pp,
                Ho_p=ho_p, Wo_p=ho_p, RO=ro, c_dim=c_dim, HEADW=headw)


def prepare_params(params, image_size):
    """Expand conv weights into GEMM matrices. Runs ONCE per parameter set."""
    geom = _geometry(params, image_size)
    layers = geom['layers']
    Hf, Cf = geom['Hf'], geom['Cf']
    HfCf = Hf * Cf
    Ho_p, Wo_p, RO = geom['Ho_p'], geom['Wo_p'], geom['RO']
    c_dim, HEADW = geom['c_dim'], geom['HEADW']
    kp, pp = geom['kp'], geom['pp']

    arrays = []
    for L, (w, b) in zip(layers, params['main']):
        wex = _expand_weight_np(w, L['Hin'], L['s'], L['p'])
        # fold taps into K: (kh, W*Cin, Wo*Cout) -> (kh*W*Cin, Wo*Cout)
        arrays.append(jnp.asarray(
            wex.reshape(L['kh'] * L['Win'] * L['Cin'], L['Wo'] * L['Cout'])))
        bex = np.tile(np.asarray(b, np.float32), (L['Wo'],)).reshape(1, -1)
        arrays.append(jnp.asarray(bex))

    # Fused head weight over the UNPADDED final feature map h (Hf rows of
    # width Hf*Cf): columns = [prob Toeplitz (RO) | cond (c_dim) | zero pad].
    wpx = _expand_weight_np(params['prob'], Hf, 1, pp)       # (kp, HfCf, Wo_p)
    wh_prob = np.zeros((Hf, HfCf, Ho_p, Wo_p), np.float32)
    for oy in range(Ho_p):
        for r in range(Hf):
            i = r + pp - oy                     # tap index = padded_row - oy
            if 0 <= i < kp:
                wh_prob[r, :, oy, :] = wpx[i]
    wcx = _expand_weight_np(params['cond'], Hf, 1, 0)        # (Hf, HfCf, c_dim)
    w_head = np.zeros((Hf * HfCf, HEADW), np.float32)
    w_head[:, :RO] = wh_prob.reshape(Hf * HfCf, RO)
    w_head[:, RO:RO + c_dim] = wcx.reshape(Hf * HfCf, c_dim)
    arrays.append(jnp.asarray(w_head))
    return geom, tuple(arrays)


# ---------------------------------------------------------------------------
# Fused forward pass: one pallas_call for the whole network.
# ---------------------------------------------------------------------------
def make_discriminator_forward(geom):
    layers = geom['layers']
    R = len(layers)
    Hf, Cf = geom['Hf'], geom['Cf']
    HfCf = Hf * Cf
    Ho_p, Wo_p, RO = geom['Ho_p'], geom['Wo_p'], geom['RO']
    c_dim, HEADW = geom['c_dim'], geom['HEADW']
    L0 = layers[0]
    HP0 = L0['Hin'] + 2 * L0['p']
    WC0 = L0['Win'] * L0['Cin']

    @jax.jit
    def forward(x_nchw, arrays):
        N = x_nchw.shape[0]
        # <=2 grid steps: splits the batch across v7x's two TensorCores while
        # keeping per-step pipeline overhead negligible on single-TC v5e/v6e,
        # and folds the per-step images into the GEMM M dimension.
        NB = max(1, (N + 1) // 2)
        NBLK = -(-N // NB)
        Ntot = NB * NBLK

        x = jnp.transpose(x_nchw, (0, 2, 3, 1)).astype(jnp.float32)     # NHWC
        x = jnp.pad(x, ((0, Ntot - N), (L0['p'], L0['p']), (0, 0), (0, 0)))
        xb = x.reshape(NBLK, NB * HP0, WC0)        # one 2-D slab per grid step

        def kernel(*refs):
            x_ref = refs[0]
            wb = refs[1:1 + 2 * R]                 # interleaved (W, bias)
            wh_ref = refs[1 + 2 * R]
            out_ref = refs[2 + 2 * R]
            scr = refs[3 + 2 * R:]
            xs, mid, xh = scr[:R], scr[R:2 * R - 1], scr[2 * R - 1]

            # Clear ONLY the vertical pad rows of the inter-layer buffers
            # (data rows are fully overwritten below; no full-buffer zero fill).
            for li in range(R - 1):
                p = layers[li + 1]['p']
                HPn = layers[li]['Ho'] + 2 * p
                WCn = layers[li + 1]['Win'] * layers[li + 1]['Cin']
                zpad = jnp.zeros((p, WCn), jnp.float32)
                for n in range(NB):
                    mid[li][n * HPn:n * HPn + p, :] = zpad
                    mid[li][(n + 1) * HPn - p:(n + 1) * HPn, :] = zpad

            # Backbone: conv(k=4,s=2,p=1) + bias + LeakyReLU, ONE GEMM / layer.
            for li in range(R):
                L = layers[li]
                HPi = L['Hin'] + 2 * L['p']
                WCi = L['Win'] * L['Cin']
                Ho, kh, s = L['Ho'], L['kh'], L['s']
                src = x_ref if li == 0 else mid[li - 1]
                xsl = xs[li]
                # im2row: taps -> adjacent lane blocks (K); images/rows -> M.
                for n in range(NB):
                    for i in range(kh):
                        xsl[n * Ho:(n + 1) * Ho, i * WCi:(i + 1) * WCi] = (
                            src[pl.ds(n * HPi + i, Ho, stride=s), :])
                y = jnp.dot(xsl[...], wb[2 * li][...],
                            preferred_element_type=jnp.float32) + wb[2 * li + 1][...]
                y = jnp.where(y >= 0, y, _LRELU_SLOPE * y)      # LeakyReLU(0.01)
                if li < R - 1:
                    p = layers[li + 1]['p']
                    HPn = Ho + 2 * p
                    for n in range(NB):
                        mid[li][n * HPn + p:n * HPn + p + Ho, :] = \
                            y[n * Ho:(n + 1) * Ho, :]
                else:
                    # Final activation rows -> lane blocks of the head operand.
                    for n in range(NB):
                        for r in range(Hf):
                            xh[n:n + 1, r * HfCf:(r + 1) * HfCf] = \
                                y[n * Hf + r:n * Hf + r + 1, :]

            # Both heads in one GEMM; cols = [prob | cond logits | exact 0s].
            res = jnp.dot(xh[...], wh_ref[...], preferred_element_type=jnp.float32)
            logits = res[:, RO:RO + c_dim]
            m = jnp.max(logits, axis=-1, keepdims=True)
            e = jnp.exp(logits - m)
            soft = e / jnp.sum(e, axis=-1, keepdims=True)   # exact div (1e-4 check)
            out_ref[...] = res                      # lane-dense full-width store
            out_ref[:, RO:RO + c_dim] = soft        # overwrite logits w/ softmax

        # Weight/bias blocks use a constant index map -> DMA'd once and kept
        # resident; default double-buffering is harmless at ~250 KB total.
        in_specs = [pl.BlockSpec((None, NB * HP0, WC0), lambda b: (b, 0, 0))]
        for a in arrays:
            in_specs.append(pl.BlockSpec(a.shape, lambda b: (0, 0)))
        out_specs = pl.BlockSpec((None, NB, HEADW), lambda b: (b, 0, 0))
        out_shape = jax.ShapeDtypeStruct((NBLK, NB, HEADW), jnp.float32)

        scratch = []
        for L in layers:                        # per-layer im2row GEMM operand
            scratch.append(pltpu.VMEM(
                (NB * L['Ho'], L['kh'] * L['Win'] * L['Cin']), jnp.float32))
        for li in range(R - 1):                 # vertically padded activations
            HPn = layers[li]['Ho'] + 2 * layers[li + 1]['p']
            WCn = layers[li + 1]['Win'] * layers[li + 1]['Cin']
            scratch.append(pltpu.VMEM((NB * HPn, WCn), jnp.float32))
        scratch.append(pltpu.VMEM((NB, Hf * HfCf), jnp.float32))  # head operand

        out = pl.pallas_call(
            kernel,
            out_shape=out_shape,
            grid=(NBLK,),
            in_specs=in_specs,
            out_specs=out_specs,
            scratch_shapes=scratch,
            compiler_params=pltpu.CompilerParams(
                dimension_semantics=("parallel",),   # megacore split on v7x
            ),
        )(xb, *arrays)

        out = out.reshape(Ntot, HEADW)[:N]
        # torch: out_real.squeeze(), softmax(out_aux.squeeze(), dim=1)
        out_real = jnp.squeeze(out[:, :RO].reshape(N, 1, Ho_p, Wo_p))
        out_aux = out[:, RO:RO + c_dim]
        return out_real, out_aux

    return forward


# ---------------------------------------------------------------------------
# Parameter init (matches the PyTorch module's shapes)
# ---------------------------------------------------------------------------
def init_params(key, c_dim=5, image_size=16, conv_dim=8, repeat_num=3):
    n_keys = 2 * repeat_num + 2
    keys = jax.random.split(key, n_keys)
    params = {'main': []}
    ki = 0
    in_c, out_c = 3, conv_dim
    for _ in range(repeat_num):
        fan_in = in_c * 4 * 4
        bound = 1.0 / (fan_in ** 0.5)
        w = jax.random.uniform(keys[ki], (out_c, in_c, 4, 4), jnp.float32, -bound, bound); ki += 1
        b = jax.random.uniform(keys[ki], (out_c,), jnp.float32, -bound, bound); ki += 1
        params['main'].append((w, b))
        in_c, out_c = out_c, out_c * 2
    curr = in_c
    k_size = image_size // (2 ** repeat_num)
    bound = 1.0 / ((curr * 3 * 3) ** 0.5)
    params['prob'] = jax.random.uniform(keys[ki], (1, curr, 3, 3), jnp.float32, -bound, bound); ki += 1
    bound = 1.0 / ((curr * k_size * k_size) ** 0.5)
    params['cond'] = jax.random.uniform(keys[ki], (c_dim, curr, k_size, k_size),
                                        jnp.float32, -bound, bound)
    return params


# ---------------------------------------------------------------------------
# Pure-JAX reference (for validation)
# ---------------------------------------------------------------------------
def reference_forward(x_nchw, params):
    dn = ('NCHW', 'OIHW', 'NCHW')
    h = x_nchw.astype(jnp.float32)
    for (w, b) in params['main']:
        h = jax.lax.conv_general_dilated(h, w, (2, 2), ((1, 1), (1, 1)),
                                         dimension_numbers=dn)
        h = h + b.reshape(1, -1, 1, 1)
        h = jnp.where(h >= 0, h, 0.01 * h)
    out_real = jax.lax.conv_general_dilated(h, params['prob'], (1, 1),
                                            ((1, 1), (1, 1)), dimension_numbers=dn)
    out_aux = jax.lax.conv_general_dilated(h, params['cond'], (1, 1),
                                           ((0, 0), (0, 0)), dimension_numbers=dn)
    return jnp.squeeze(out_real), jax.nn.softmax(jnp.squeeze(out_aux), axis=1)


# ---------------------------------------------------------------------------
if __name__ == "__main__":
    c_dim, image_size, conv_dim, repeat_num, batch = 5, 16, 8, 3, 2

    key = jax.random.PRNGKey(0)
    k_in, k_par = jax.random.split(key)
    x = jax.random.normal(k_in, (batch, 3, image_size, image_size), jnp.float32)
    params = init_params(k_par, c_dim=c_dim, image_size=image_size,
                         conv_dim=conv_dim, repeat_num=repeat_num)

    # One-time weight expansion (hoisted out of the per-call path).
    geom, prep_arrays = prepare_params(params, image_size)
    discriminator_forward = make_discriminator_forward(geom)

    out_real, out_aux_sm = discriminator_forward(x, prep_arrays)
    jax.block_until_ready((out_real, out_aux_sm))

    ref_real, ref_aux = reference_forward(x, params)
    assert out_real.shape == ref_real.shape == (batch, 2, 2)
    assert out_aux_sm.shape == ref_aux.shape == (batch, c_dim)
    assert jnp.allclose(out_real, ref_real, atol=1e-4, rtol=1e-4)
    assert jnp.allclose(out_aux_sm, ref_aux, atol=1e-4, rtol=1e-4)

    print("KERNEL_OK")
</pallas_src>

<mosaic_0001>
module attributes {stable_mosaic.version = 11 : i64} {
  func.func @kernel(%arg0: i32, %arg1: memref<1x18x48xf32, #tpu.memory_space<vmem>>, %arg2: memref<192x64xf32, #tpu.memory_space<vmem>>, %arg3: memref<1x64xf32, #tpu.memory_space<vmem>>, %arg4: memref<256x64xf32, #tpu.memory_space<vmem>>, %arg5: memref<1x64xf32, #tpu.memory_space<vmem>>, %arg6: memref<256x64xf32, #tpu.memory_space<vmem>>, %arg7: memref<1x64xf32, #tpu.memory_space<vmem>>, %arg8: memref<128x128xf32, #tpu.memory_space<vmem>>, %arg9: memref<1x1x128xf32, #tpu.memory_space<vmem>>, %arg10: memref<8x192xf32, #tpu.memory_space<vmem>>, %arg11: memref<4x256xf32, #tpu.memory_space<vmem>>, %arg12: memref<2x256xf32, #tpu.memory_space<vmem>>, %arg13: memref<10x64xf32, #tpu.memory_space<vmem>>, %arg14: memref<6x64xf32, #tpu.memory_space<vmem>>, %arg15: memref<1x128xf32, #tpu.memory_space<vmem>>) attributes {dimension_semantics = [#tpu.dimension_semantics<parallel>], iteration_bounds = array<i64: 2>, scalar_prefetch = 0 : i64, scratch_operands = 6 : i64, tpu.core_type = #tpu.core_type<tc>, window_params = [{transform_indices = @transform_0, window_bounds = array<i64: 1, 18, 48>}, {pipeline_mode = #tpu.pipeline_mode<synchronous>, transform_indices = @transform_1, window_bounds = array<i64: 192, 64>}, {pipeline_mode = #tpu.pipeline_mode<synchronous>, transform_indices = @transform_2, window_bounds = array<i64: 1, 64>}, {pipeline_mode = #tpu.pipeline_mode<synchronous>, transform_indices = @transform_3, window_bounds = array<i64: 256, 64>}, {pipeline_mode = #tpu.pipeline_mode<synchronous>, transform_indices = @transform_4, window_bounds = array<i64: 1, 64>}, {pipeline_mode = #tpu.pipeline_mode<synchronous>, transform_indices = @transform_5, window_bounds = array<i64: 256, 64>}, {pipeline_mode = #tpu.pipeline_mode<synchronous>, transform_indices = @transform_6, window_bounds = array<i64: 1, 64>}, {pipeline_mode = #tpu.pipeline_mode<synchronous>, transform_indices = @transform_7, window_bounds = array<i64: 128, 128>}, {transform_indices = @transform_8, window_bounds = array<i64: 1, 1, 128>}]} {
    %cst = arith.constant 0.000000e+00 : f32
    %0 = vector.broadcast %cst : f32 to vector<1x64xf32>
    %c0 = arith.constant 0 : index
    %c0_0 = arith.constant 0 : index
    %1 = vector.load %arg13[%c0, %c0_0] : memref<10x64xf32, #tpu.memory_space<vmem>>, vector<1x64xf32>
    tpu.vector_store %arg13[%c0, %c0_0], %0 {strides = array<i32>} : memref<10x64xf32, #tpu.memory_space<vmem>>, vector<1x64xf32>,
    %c9 = arith.constant 9 : index
    %c0_1 = arith.constant 0 : index
    %2 = vector.load %arg13[%c9, %c0_1] : memref<10x64xf32, #tpu.memory_space<vmem>>, vector<1x64xf32>
    tpu.vector_store %arg13[%c9, %c0_1], %0 {strides = array<i32>} : memref<10x64xf32, #tpu.memory_space<vmem>>, vector<1x64xf32>,
    %cst_2 = arith.constant 0.000000e+00 : f32
    %3 = vector.broadcast %cst_2 : f32 to vector<1x64xf32>
    %c0_3 = arith.constant 0 : index
    %c0_4 = arith.constant 0 : index
    %4 = vector.load %arg14[%c0_3, %c0_4] : memref<6x64xf32, #tpu.memory_space<vmem>>, vector<1x64xf32>
    tpu.vector_store %arg14[%c0_3, %c0_4], %3 {strides = array<i32>} : memref<6x64xf32, #tpu.memory_space<vmem>>, vector<1x64xf32>,
    %c5 = arith.constant 5 : index
    %c0_5 = arith.constant 0 : index
    %5 = vector.load %arg14[%c5, %c0_5] : memref<6x64xf32, #tpu.memory_space<vmem>>, vector<1x64xf32>
    tpu.vector_store %arg14[%c5, %c0_5], %3 {strides = array<i32>} : memref<6x64xf32, #tpu.memory_space<vmem>>, vector<1x64xf32>,
    %c0_6 = arith.constant 0 : index
    %c0_7 = arith.constant 0 : index
    %c0_8 = arith.constant 0 : index
    %6 = tpu.strided_load %arg1[%c0_6, %c0_7, %c0_8] {strides = array<i32: 1, 2, 1>} : memref<1x18x48xf32, #tpu.memory_space<vmem>>, vector<1x8x48xf32>
    %7 = vector.shape_cast %6 : vector<1x8x48xf32> to vector<8x48xf32>
    %c0_9 = arith.constant 0 : index
    %c0_10 = arith.constant 0 : index
    %8 = vector.load %arg10[%c0_9, %c0_10] : memref<8x192xf32, #tpu.memory_space<vmem>>, vector<8x48xf32>
    tpu.vector_store %arg10[%c0_9, %c0_10], %7 {strides = array<i32>} : memref<8x192xf32, #tpu.memory_space<vmem>>, vector<8x48xf32>,
    %c0_11 = arith.constant 0 : index
    %c1 = arith.constant 1 : index
    %c0_12 = arith.constant 0 : index
    %9 = tpu.strided_load %arg1[%c0_11, %c1, %c0_12] {strides = array<i32: 1, 2, 1>} : memref<1x18x48xf32, #tpu.memory_space<vmem>>, vector<1x8x48xf32>
    %10 = vector.shape_cast %9 : vector<1x8x48xf32> to vector<8x48xf32>
    %c0_13 = arith.constant 0 : index
    %c48 = arith.constant 48 : index
    %11 = vector.load %arg10[%c0_13, %c48] : memref<8x192xf32, #tpu.memory_space<vmem>>, vector<8x48xf32>
    tpu.vector_store %arg10[%c0_13, %c48], %10 {strides = array<i32>} : memref<8x192xf32, #tpu.memory_space<vmem>>, vector<8x48xf32>,
    %c0_14 = arith.constant 0 : index
    %c2 = arith.constant 2 : index
    %c0_15 = arith.constant 0 : index
    %12 = tpu.strided_load %arg1[%c0_14, %c2, %c0_15] {strides = array<i32: 1, 2, 1>} : memref<1x18x48xf32, #tpu.memory_space<vmem>>, vector<1x8x48xf32>
    %13 = vector.shape_cast %12 : vector<1x8x48xf32> to vector<8x48xf32>
    %c0_16 = arith.constant 0 : index
    %c96 = arith.constant 96 : index
    %14 = vector.load %arg10[%c0_16, %c96] : memref<8x192xf32, #tpu.memory_space<vmem>>, vector<8x48xf32>
    tpu.vector_store %arg10[%c0_16, %c96], %13 {strides = array<i32>} : memref<8x192xf32, #tpu.memory_space<vmem>>, vector<8x48xf32>,
    %c0_17 = arith.constant 0 : index
    %c3 = arith.constant 3 : index
    %c0_18 = arith.constant 0 : index
    %15 = tpu.strided_load %arg1[%c0_17, %c3, %c0_18] {strides = array<i32: 1, 2, 1>} : memref<1x18x48xf32, #tpu.memory_space<vmem>>, vector<1x8x48xf32>
    %16 = vector.shape_cast %15 : vector<1x8x48xf32> to vector<8x48xf32>
    %c0_19 = arith.constant 0 : index
    %c144 = arith.constant 144 : index
    %17 = vector.load %arg10[%c0_19, %c144] : memref<8x192xf32, #tpu.memory_space<vmem>>, vector<8x48xf32>
    tpu.vector_store %arg10[%c0_19, %c144], %16 {strides = array<i32>} : memref<8x192xf32, #tpu.memory_space<vmem>>, vector<8x48xf32>,
    %c0_20 = arith.constant 0 : index
    %c0_21 = arith.constant 0 : index
    %18 = vector.load %arg10[%c0_20, %c0_21] : memref<8x192xf32, #tpu.memory_space<vmem>>, vector<8x192xf32>
    %c0_22 = arith.constant 0 : index
    %c0_23 = arith.constant 0 : index
    %19 = vector.load %arg2[%c0_22, %c0_23] : memref<192x64xf32, #tpu.memory_space<vmem>>, vector<192x64xf32>
    %cst_24 = arith.constant dense<0.000000e+00> : vector<8x64xf32>
    %20 = tpu.matmul %18, %19, %cst_24 {dimension_numbers = #tpu.dot_dimension_numbers<[1], [0], [0], [1], [0, 0, 1, 1], [], []>} : vector<8x192xf32>, vector<192x64xf32>, vector<8x64xf32> -> vector<8x64xf32>
    %c0_25 = arith.constant 0 : index
    %c0_26 = arith.constant 0 : index
    %21 = vector.load %arg3[%c0_25, %c0_26] : memref<1x64xf32, #tpu.memory_space<vmem>>, vector<1x64xf32>
    %22 = vector.broadcast %21 : vector<1x64xf32> to vector<8x64xf32>
    %23 = arith.addf %20, %22 : vector<8x64xf32>
    %cst_27 = arith.constant 0.000000e+00 : f32
    %24 = vector.broadcast %cst_27 : f32 to vector<8x64xf32>
    %25 = arith.cmpf oge, %23, %24 : vector<8x64xf32>
    %cst_28 = arith.constant 0.00999999977 : f32
    %26 = vector.broadcast %cst_28 : f32 to vector<8x64xf32>
    %27 = arith.mulf %26, %23 : vector<8x64xf32>
    %28 = arith.select %25, %23, %27 : vector<8x64xi1>, vector<8x64xf32>
    %c1_29 = arith.constant 1 : index
    %c0_30 = arith.constant 0 : index
    %29 = vector.load %arg13[%c1_29, %c0_30] : memref<10x64xf32, #tpu.memory_space<vmem>>, vector<8x64xf32>
    tpu.vector_store %arg13[%c1_29, %c0_30], %28 {strides = array<i32>} : memref<10x64xf32, #tpu.memory_space<vmem>>, vector<8x64xf32>,
    %c0_31 = arith.constant 0 : index
    %c0_32 = arith.constant 0 : index
    %30 = tpu.strided_load %arg13[%c0_31, %c0_32] {strides = array<i32: 2, 1>} : memref<10x64xf32, #tpu.memory_space<vmem>>, vector<4x64xf32>
    %c0_33 = arith.constant 0 : index
    %c0_34 = arith.constant 0 : index
    %31 = vector.load %arg11[%c0_33, %c0_34] : memref<4x256xf32, #tpu.memory_space<vmem>>, vector<4x64xf32>
    tpu.vector_store %arg11[%c0_33, %c0_34], %30 {strides = array<i32>} : memref<4x256xf32, #tpu.memory_space<vmem>>, vector<4x64xf32>,
    %c1_35 = arith.constant 1 : index
    %c0_36 = arith.constant 0 : index
    %32 = tpu.strided_load %arg13[%c1_35, %c0_36] {strides = array<i32: 2, 1>} : memref<10x64xf32, #tpu.memory_space<vmem>>, vector<4x64xf32>
    %c0_37 = arith.constant 0 : index
    %c64 = arith.constant 64 : index
    %33 = vector.load %arg11[%c0_37, %c64] : memref<4x256xf32, #tpu.memory_space<vmem>>, vector<4x64xf32>
    tpu.vector_store %arg11[%c0_37, %c64], %32 {strides = array<i32>} : memref<4x256xf32, #tpu.memory_space<vmem>>, vector<4x64xf32>,
    %c2_38 = arith.constant 2 : index
    %c0_39 = arith.constant 0 : index
    %34 = tpu.strided_load %arg13[%c2_38, %c0_39] {strides = array<i32: 2, 1>} : memref<10x64xf32, #tpu.memory_space<vmem>>, vector<4x64xf32>
    %c0_40 = arith.constant 0 : index
    %c128 = arith.constant 128 : index
    %35 = vector.load %arg11[%c0_40, %c128] : memref<4x256xf32, #tpu.memory_space<vmem>>, vector<4x64xf32>
    tpu.vector_store %arg11[%c0_40, %c128], %34 {strides = array<i32>} : memref<4x256xf32, #tpu.memory_space<vmem>>, vector<4x64xf32>,
    %c3_41 = arith.constant 3 : index
    %c0_42 = arith.constant 0 : index
    %36 = tpu.strided_load %arg13[%c3_41, %c0_42] {strides = array<i32: 2, 1>} : memref<10x64xf32, #tpu.memory_space<vmem>>, vector<4x64xf32>
    %c0_43 = arith.constant 0 : index
    %c192 = arith.constant 192 : index
    %37 = vector.load %arg11[%c0_43, %c192] : memref<4x256xf32, #tpu.memory_space<vmem>>, vector<4x64xf32>
    tpu.vector_store %arg11[%c0_43, %c192], %36 {strides = array<i32>} : memref<4x256xf32, #tpu.memory_space<vmem>>, vector<4x64xf32>,
    %c0_44 = arith.constant 0 : index
    %c0_45 = arith.constant 0 : index
    %38 = vector.load %arg11[%c0_44, %c0_45] : memref<4x256xf32, #tpu.memory_space<vmem>>, vector<4x256xf32>
    %c0_46 = arith.constant 0 : index
    %c0_47 = arith.constant 0 : index
    %39 = vector.load %arg4[%c0_46, %c0_47] : memref<256x64xf32, #tpu.memory_space<vmem>>, vector<256x64xf32>
    %cst_48 = arith.constant dense<0.000000e+00> : vector<4x64xf32>
    %40 = tpu.matmul %38, %39, %cst_48 {dimension_numbers = #tpu.dot_dimension_numbers<[1], [0], [0], [1], [0, 0, 1, 1], [], []>} : vector<4x256xf32>, vector<256x64xf32>, vector<4x64xf32> -> vector<4x64xf32>
    %c0_49 = arith.constant 0 : index
    %c0_50 = arith.constant 0 : index
    %41 = vector.load %arg5[%c0_49, %c0_50] : memref<1x64xf32, #tpu.memory_space<vmem>>, vector<1x64xf32>
    %42 = vector.broadcast %41 : vector<1x64xf32> to vector<4x64xf32>
    %43 = arith.addf %40, %42 : vector<4x64xf32>
    %cst_51 = arith.constant 0.000000e+00 : f32
    %44 = vector.broadcast %cst_51 : f32 to vector<4x64xf32>
    %45 = arith.cmpf oge, %43, %44 : vector<4x64xf32>
    %cst_52 = arith.constant 0.00999999977 : f32
    %46 = vector.broadcast %cst_52 : f32 to vector<4x64xf32>
    %47 = arith.mulf %46, %43 : vector<4x64xf32>
    %48 = arith.select %45, %43, %47 : vector<4x64xi1>, vector<4x64xf32>
    %c1_53 = arith.constant 1 : index
    %c0_54 = arith.constant 0 : index
    %49 = vector.load %arg14[%c1_53, %c0_54] : memref<6x64xf32, #tpu.memory_space<vmem>>, vector<4x64xf32>
    tpu.vector_store %arg14[%c1_53, %c0_54], %48 {strides = array<i32>} : memref<6x64xf32, #tpu.memory_space<vmem>>, vector<4x64xf32>,
    %c0_55 = arith.constant 0 : index
    %c0_56 = arith.constant 0 : index
    %50 = tpu.strided_load %arg14[%c0_55, %c0_56] {strides = array<i32: 2, 1>} : memref<6x64xf32, #tpu.memory_space<vmem>>, vector<2x64xf32>
    %c0_57 = arith.constant 0 : index
    %c0_58 = arith.constant 0 : index
    %51 = vector.load %arg12[%c0_57, %c0_58] : memref<2x256xf32, #tpu.memory_space<vmem>>, vector<2x64xf32>
    tpu.vector_store %arg12[%c0_57, %c0_58], %50 {strides = array<i32>} : memref<2x256xf32, #tpu.memory_space<vmem>>, vector<2x64xf32>,
    %c1_59 = arith.constant 1 : index
    %c0_60 = arith.constant 0 : index
    %52 = tpu.strided_load %arg14[%c1_59, %c0_60] {strides = array<i32: 2, 1>} : memref<6x64xf32, #tpu.memory_space<vmem>>, vector<2x64xf32>
    %c0_61 = arith.constant 0 : index
    %c64_62 = arith.constant 64 : index
    %53 = vector.load %arg12[%c0_61, %c64_62] : memref<2x256xf32, #tpu.memory_space<vmem>>, vector<2x64xf32>
    tpu.vector_store %arg12[%c0_61, %c64_62], %52 {strides = array<i32>} : memref<2x256xf32, #tpu.memory_space<vmem>>, vector<2x64xf32>,
    %c2_63 = arith.constant 2 : index
    %c0_64 = arith.constant 0 : index
    %54 = tpu.strided_load %arg14[%c2_63, %c0_64] {strides = array<i32: 2, 1>} : memref<6x64xf32, #tpu.memory_space<vmem>>, vector<2x64xf32>
    %c0_65 = arith.constant 0 : index
    %c128_66 = arith.constant 128 : index
    %55 = vector.load %arg12[%c0_65, %c128_66] : memref<2x256xf32, #tpu.memory_space<vmem>>, vector<2x64xf32>
    tpu.vector_store %arg12[%c0_65, %c128_66], %54 {strides = array<i32>} : memref<2x256xf32, #tpu.memory_space<vmem>>, vector<2x64xf32>,
    %c3_67 = arith.constant 3 : index
    %c0_68 = arith.constant 0 : index
    %56 = tpu.strided_load %arg14[%c3_67, %c0_68] {strides = array<i32: 2, 1>} : memref<6x64xf32, #tpu.memory_space<vmem>>, vector<2x64xf32>
    %c0_69 = arith.constant 0 : index
    %c192_70 = arith.constant 192 : index
    %57 = vector.load %arg12[%c0_69, %c192_70] : memref<2x256xf32, #tpu.memory_space<vmem>>, vector<2x64xf32>
    tpu.vector_store %arg12[%c0_69, %c192_70], %56 {strides = array<i32>} : memref<2x256xf32, #tpu.memory_space<vmem>>, vector<2x64xf32>,
    %c0_71 = arith.constant 0 : index
    %c0_72 = arith.constant 0 : index
    %58 = vector.load %arg12[%c0_71, %c0_72] : memref<2x256xf32, #tpu.memory_space<vmem>>, vector<2x256xf32>
    %c0_73 = arith.constant 0 : index
    %c0_74 = arith.constant 0 : index
    %59 = vector.load %arg6[%c0_73, %c0_74] : memref<256x64xf32, #tpu.memory_space<vmem>>, vector<256x64xf32>
    %cst_75 = arith.constant dense<0.000000e+00> : vector<2x64xf32>
    %60 = tpu.matmul %58, %59, %cst_75 {dimension_numbers = #tpu.dot_dimension_numbers<[1], [0], [0], [1], [0, 0, 1, 1], [], []>} : vector<2x256xf32>, vector<256x64xf32>, vector<2x64xf32> -> vector<2x64xf32>
    %c0_76 = arith.constant 0 : index
    %c0_77 = arith.constant 0 : index
    %61 = vector.load %arg7[%c0_76, %c0_77] : memref<1x64xf32, #tpu.memory_space<vmem>>, vector<1x64xf32>
    %62 = vector.broadcast %61 : vector<1x64xf32> to vector<2x64xf32>
    %63 = arith.addf %60, %62 : vector<2x64xf32>
    %cst_78 = arith.constant 0.000000e+00 : f32
    %64 = vector.broadcast %cst_78 : f32 to vector<2x64xf32>
    %65 = arith.cmpf oge, %63, %64 : vector<2x64xf32>
    %cst_79 = arith.constant 0.00999999977 : f32
    %66 = vector.broadcast %cst_79 : f32 to vector<2x64xf32>
    %67 = arith.mulf %66, %63 : vector<2x64xf32>
    %68 = arith.select %65, %63, %67 : vector<2x64xi1>, vector<2x64xf32>
    %69 = vector.extract_strided_slice %68 {offsets = [0, 0], sizes = [1, 64], strides = [1, 1]} : vector<2x64xf32> to vector<1x64xf32>
    %c0_80 = arith.constant 0 : index
    %c0_81 = arith.constant 0 : index
    %70 = vector.load %arg15[%c0_80, %c0_81] : memref<1x128xf32, #tpu.memory_space<vmem>>, vector<1x64xf32>
    tpu.vector_store %arg15[%c0_80, %c0_81], %69 {strides = array<i32>} : memref<1x128xf32, #tpu.memory_space<vmem>>, vector<1x64xf32>,
    %71 = vector.extract_strided_slice %68 {offsets = [1, 0], sizes = [1, 64], strides = [1, 1]} : vector<2x64xf32> to vector<1x64xf32>
    %c0_82 = arith.constant 0 : index
    %c64_83 = arith.constant 64 : index
    %72 = vector.load %arg15[%c0_82, %c64_83] : memref<1x128xf32, #tpu.memory_space<vmem>>, vector<1x64xf32>
    tpu.vector_store %arg15[%c0_82, %c64_83], %71 {strides = array<i32>} : memref<1x128xf32, #tpu.memory_space<vmem>>, vector<1x64xf32>,
    %c0_84 = arith.constant 0 : index
    %c0_85 = arith.constant 0 : index
    %73 = vector.load %arg15[%c0_84, %c0_85] : memref<1x128xf32, #tpu.memory_space<vmem>>, vector<1x128xf32>
    %c0_86 = arith.constant 0 : index
    %c0_87 = arith.constant 0 : index
    %74 = vector.load %arg8[%c0_86, %c0_87] : memref<128x128xf32, #tpu.memory_space<vmem>>, vector<128x128xf32>
    %cst_88 = arith.constant dense<0.000000e+00> : vector<1x128xf32>
    %75 = tpu.matmul %73, %74, %cst_88 {dimension_numbers = #tpu.dot_dimension_numbers<[1], [0], [0], [1], [0, 0, 1, 1], [], []>} : vector<1x128xf32>, vector<128x128xf32>, vector<1x128xf32> -> vector<1x128xf32>
    %76 = vector.extract_strided_slice %75 {offsets = [0, 4], sizes = [1, 5], strides = [1, 1]} : vector<1x128xf32> to vector<1x5xf32>
    %cst_89 = arith.constant dense<0xFF800000> : vector<1xf32>
    %77 = vector.multi_reduction <maximumf>, %76, %cst_89 [1] : vector<1x5xf32> to vector<1xf32>
    %78 = vector.shape_cast %77 : vector<1xf32> to vector<1x1xf32>
    %79 = vector.broadcast %78 : vector<1x1xf32> to vector<1x5xf32>
    %80 = arith.subf %76, %79 : vector<1x5xf32>
    %81 = math.exp %80 : vector<1x5xf32>
    %cst_90 = arith.constant dense<0.000000e+00> : vector<1xf32>
    %82 = vector.multi_reduction <add>, %81, %cst_90 [1] : vector<1x5xf32> to vector<1xf32>
    %83 = vector.shape_cast %82 : vector<1xf32> to vector<1x1xf32>
    %84 = vector.broadcast %83 : vector<1x1xf32> to vector<1x5xf32>
    %85 = arith.divf %81, %84 : vector<1x5xf32>
    %c0_91 = arith.constant 0 : index
    %c0_92 = arith.constant 0 : index
    %c0_93 = arith.constant 0 : index
    %86 = vector.load %arg9[%c0_91, %c0_92, %c0_93] : memref<1x1x128xf32, #tpu.memory_space<vmem>>, vector<1x1x128xf32>
    %87 = vector.shape_cast %86 : vector<1x1x128xf32> to vector<1x128xf32>
    %88 = vector.shape_cast %75 : vector<1x128xf32> to vector<1x1x128xf32>
    tpu.vector_store %arg9[%c0_91, %c0_92, %c0_93], %88 {strides = array<i32>} : memref<1x1x128xf32, #tpu.memory_space<vmem>>, vector<1x1x128xf32>,
    %c0_94 = arith.constant 0 : index
    %c0_95 = arith.constant 0 : index
    %c4 = arith.constant 4 : index
    %89 = vector.load %arg9[%c0_94, %c0_95, %c4] : memref<1x1x128xf32, #tpu.memory_space<vmem>>, vector<1x1x5xf32>
    %90 = vector.shape_cast %89 : vector<1x1x5xf32> to vector<1x5xf32>
    %91 = vector.shape_cast %85 : vector<1x5xf32> to vector<1x1x5xf32>
    tpu.vector_store %arg9[%c0_94, %c0_95, %c4], %91 {strides = array<i32>} : memref<1x1x128xf32, #tpu.memory_space<vmem>>, vector<1x1x5xf32>,
    return
  }
  func.func @transform_0(%arg0: i32) -> (i32, i32, i32) {
    %c0_i32 = arith.constant 0 : i32
    %c0_i32_0 = arith.constant 0 : i32
    %c0_i32_1 = arith.constant 0 : i32
    return %arg0, %c0_i32, %c0_i32_0 : i32, i32, i32
  }
  func.func @transform_1(%arg0: i32) -> (i32, i32) {
    %c0_i32 = arith.constant 0 : i32
    %c0_i32_0 = arith.constant 0 : i32
    %c0_i32_1 = arith.constant 0 : i32
    return %c0_i32, %c0_i32_0 : i32, i32
  }
  func.func @transform_2(%arg0: i32) -> (i32, i32) {
    %c0_i32 = arith.constant 0 : i32
    %c0_i32_0 = arith.constant 0 : i32
    %c0_i32_1 = arith.constant 0 : i32
    return %c0_i32, %c0_i32_0 : i32, i32
  }
  func.func @transform_3(%arg0: i32) -> (i32, i32) {
    %c0_i32 = arith.constant 0 : i32
    %c0_i32_0 = arith.constant 0 : i32
    %c0_i32_1 = arith.constant 0 : i32
    return %c0_i32, %c0_i32_0 : i32, i32
  }
  func.func @transform_4(%arg0: i32) -> (i32, i32) {
    %c0_i32 = arith.constant 0 : i32
    %c0_i32_0 = arith.constant 0 : i32
    %c0_i32_1 = arith.constant 0 : i32
    return %c0_i32, %c0_i32_0 : i32, i32
  }
  func.func @transform_5(%arg0: i32) -> (i32, i32) {
    %c0_i32 = arith.constant 0 : i32
    %c0_i32_0 = arith.constant 0 : i32
    %c0_i32_1 = arith.constant 0 : i32
    return %c0_i32, %c0_i32_0 : i32, i32
  }
  func.func @transform_6(%arg0: i32) -> (i32, i32) {
    %c0_i32 = arith.constant 0 : i32
    %c0_i32_0 = arith.constant 0 : i32
    %c0_i32_1 = arith.constant 0 : i32
    return %c0_i32, %c0_i32_0 : i32, i32
  }
  func.func @transform_7(%arg0: i32) -> (i32, i32) {
    %c0_i32 = arith.constant 0 : i32
    %c0_i32_0 = arith.constant 0 : i32
    %c0_i32_1 = arith.constant 0 : i32
    return %c0_i32, %c0_i32_0 : i32, i32
  }
  func.func @transform_8(%arg0: i32) -> (i32, i32, i32) {
    %c0_i32 = arith.constant 0 : i32
    %c0_i32_0 = arith.constant 0 : i32
    %c0_i32_1 = arith.constant 0 : i32
    return %arg0, %c0_i32, %c0_i32_0 : i32, i32, i32
  }
}

</mosaic_0001>

<llo_original>
// kernel: forward.1
$region0: #{forward.1}
  #allocation0 [shape = 'u32[]', space=smem, size = 0x4, offset = 0x4, fixed_abs, tag = 'smem constant byte address 0x4 - core index']
  #allocation1 [shape = 'u32[72,128]{1,0:T(1,128)}', space=vmem, size = 0x9000, scoped, tag = 'internal scratch']
  #allocation2 [shape = 'f32[8,192]{1,0:T(8,128)}', space=vmem, size = 0x2000, scoped, tag = 'scratch operand']
  #allocation3 [shape = 'f32[4,256]{1,0:T(4,128)}', space=vmem, size = 0x1000, scoped, tag = 'scratch operand']
  #allocation4 [shape = 'f32[2,256]{1,0:T(2,128)}', space=vmem, size = 0x800, scoped, tag = 'scratch operand']
  #allocation5 [shape = 'f32[10,64]{1,0:T(8,128)}', space=vmem, size = 0x2000, scoped, tag = 'scratch operand']
  #allocation6 [shape = 'f32[6,64]{1,0:T(8,128)}', space=vmem, size = 0x1000, scoped, tag = 'scratch operand']
  #allocation7 [shape = 'f32[1,128]{1,0:T(1,128)}', space=vmem, size = 0x200, scoped, tag = 'scratch operand']
  %s0 = inlined_call_operand.vmem [shape: f32[2,18,48], index: 0, kind: input, shape index: {}]
  %s1 = inlined_call_operand.vmem [shape: f32[192,64], index: 1, kind: input, shape index: {}]
  %s2 = inlined_call_operand.vmem [shape: f32[1,64], index: 2, kind: input, shape index: {}]
  %s3 = inlined_call_operand.vmem [shape: f32[256,64], index: 3, kind: input, shape index: {}]
  %s4 = inlined_call_operand.vmem [shape: f32[1,64], index: 4, kind: input, shape index: {}]
  %s5 = inlined_call_operand.vmem [shape: f32[256,64], index: 5, kind: input, shape index: {}]
  %s6 = inlined_call_operand.vmem [shape: f32[1,64], index: 6, kind: input, shape index: {}]
  %s7 = inlined_call_operand.vmem [shape: f32[128,128], index: 7, kind: input, shape index: {}]
  %s8 = inlined_call_operand.vmem [shape: f32[2,1,128], index: 8, kind: output, shape index: {}]
  %s9 = sld [smem:[#allocation0]]
  $region65: #{forward.1} parent=0
    _
  %s11 = ssub.s32 1, %s9
  %s12 = scalar_select 0, %s11, %s9
  loop: start=0, step=1, limit=4
  $region2: #{forward.1} parent=0 // loop_pre_header
    _
  $region3: #{forward.1} parent=0 // loop_header
    %s14 = sphi 0, %s18
    %p15 = scmp.ge.s32.totalorder %s14, 4
    %s24 = sphi 0, %s26
    %s27 = sphi 0, %s24
    %s28 = sphi 0, %s27
    %s44 = sphi 0, %s28
    %s48 = sphi 0, %s48
    %s50 = sphi 0, %s48
    %s51 = sphi 0, %s50
    %s65 = sphi 0, %s51
    %s69 = sphi 0, %s69
    %s71 = sphi 0, %s69
    %s72 = sphi 0, %s71
    %s86 = sphi 0, %s72
    %s90 = sphi 0, %s90
    %s92 = sphi 0, %s90
    %s93 = sphi 0, %s92
    %s107 = sphi 0, %s93
    %s111 = sphi 0, %s111
    %s113 = sphi 0, %s111
    %s114 = sphi 0, %s113
    %s128 = sphi 0, %s114
    %s132 = sphi 0, %s132
    %s134 = sphi 0, %s132
    %s135 = sphi 0, %s134
    %s149 = sphi 0, %s135
    %s153 = sphi 0, %s153
    %s155 = sphi 0, %s153
    %s156 = sphi 0, %s155
    %s170 = sphi 0, %s156
    %s174 = sphi 0, %s174
    %s176 = sphi 0, %s174
    %s177 = sphi 0, %s176
    %s191 = sphi 0, %s177
    %s197 = sphi 0, %s199
    %s200 = sphi 0, %s197
    %s201 = sphi 0, %s200
    %s217 = sphi 0, %s201
  $region4: #{forward.1} parent=0 // loop_header_branch
    %17 = sbr.rel (%p15) target = $region8
  $region5: #{forward.1} parent=0 // loop_body
    %s19 = ssub.s32 %s14, 1
    %s20 = ssub.s32 %s14, 2
    %s21 = sadd.s32 %s14, 1
    %s22 = ssub.s32 %s14, %s21
    %p23 = scmp.eq.s32.totalorder %s22, 0
    %s25 = sadd.s32 %s24, 1
    %s26 = scalar_select %p23, %s24, %s25
    %p29 = pneg %p23
    %p30 = scmp.eq.s32.totalorder %s14, 1
    %p31 = por %p29, %p30
    %p32 = scmp.ne.s32.totalorder %s24, %s27
    %p33 = scmp.eq.s32.totalorder %s14, 0
    %p34 = por %p32, %p33
    %p35 = scmp.ne.s32.totalorder %s24, %s27
    %p36 = scmp.eq.s32.totalorder %s19, 1
    %p37 = por %p35, %p36
    %p38 = scmp.ne.s32.totalorder %s27, %s28
    %p39 = scmp.eq.s32.totalorder %s19, 0
    %p40 = por %p38, %p39
    %p41 = scmp.ne.s32.totalorder %s27, %s28
    %p42 = scmp.eq.s32.totalorder %s20, 1
    %p43 = por %p41, %p42
    %p45 = scmp.ne.s32.totalorder %s28, %s44
    %p46 = scmp.eq.s32.totalorder %s20, 0
    %p47 = por %p45, %p46
    %s49 = sadd.s32 %s48, 1
    %p52 = scmp.eq.s32.totalorder %s14, 1
    %p53 = scmp.ne.s32.totalorder %s48, %s50
    %p54 = scmp.eq.s32.totalorder %s14, 0
    %p55 = por %p53, %p54
    %p56 = scmp.ne.s32.totalorder %s48, %s50
    %p57 = scmp.eq.s32.totalorder %s19, 1
    %p58 = por %p56, %p57
    %p59 = scmp.ne.s32.totalorder %s50, %s51
    %p60 = scmp.eq.s32.totalorder %s19, 0
    %p61 = por %p59, %p60
    %p62 = scmp.ne.s32.totalorder %s50, %s51
    %p63 = scmp.eq.s32.totalorder %s20, 1
    %p64 = por %p62, %p63
    %p66 = scmp.ne.s32.totalorder %s51, %s65
    %p67 = scmp.eq.s32.totalorder %s20, 0
    %p68 = por %p66, %p67
    %s70 = sadd.s32 %s69, 1
    %p73 = scmp.eq.s32.totalorder %s14, 1
    %p74 = scmp.ne.s32.totalorder %s69, %s71
    %p75 = scmp.eq.s32.totalorder %s14, 0
    %p76 = por %p74, %p75
    %p77 = scmp.ne.s32.totalorder %s69, %s71
    %p78 = scmp.eq.s32.totalorder %s19, 1
    %p79 = por %p77, %p78
    %p80 = scmp.ne.s32.totalorder %s71, %s72
    %p81 = scmp.eq.s32.totalorder %s19, 0
    %p82 = por %p80, %p81
    %p83 = scmp.ne.s32.totalorder %s71, %s72
    %p84 = scmp.eq.s32.totalorder %s20, 1
    %p85 = por %p83, %p84
    %p87 = scmp.ne.s32.totalorder %s72, %s86
    %p88 = scmp.eq.s32.totalorder %s20, 0
    %p89 = por %p87, %p88
    %s91 = sadd.s32 %s90, 1
    %p94 = scmp.eq.s32.totalorder %s14, 1
    %p95 = scmp.ne.s32.totalorder %s90, %s92
    %p96 = scmp.eq.s32.totalorder %s14, 0
    %p97 = por %p95, %p96
    %p98 = scmp.ne.s32.totalorder %s90, %s92
    %p99 = scmp.eq.s32.totalorder %s19, 1
    %p100 = por %p98, %p99
    %p101 = scmp.ne.s32.totalorder %s92, %s93
    %p102 = scmp.eq.s32.totalorder %s19, 0
    %p103 = por %p101, %p102
    %p104 = scmp.ne.s32.totalorder %s92, %s93
    %p105 = scmp.eq.s32.totalorder %s20, 1
    %p106 = por %p104, %p105
    %p108 = scmp.ne.s32.totalorder %s93, %s107
    %p109 = scmp.eq.s32.totalorder %s20, 0
    %p110 = por %p108, %p109
    %s112 = sadd.s32 %s111, 1
    %p115 = scmp.eq.s32.totalorder %s14, 1
    %p116 = scmp.ne.s32.totalorder %s111, %s113
    %p117 = scmp.eq.s32.totalorder %s14, 0
    %p118 = por %p116, %p117
    %p119 = scmp.ne.s32.totalorder %s111, %s113
    %p120 = scmp.eq.s32.totalorder %s19, 1
    %p121 = por %p119, %p120
    %p122 = scmp.ne.s32.totalorder %s113, %s114
    %p123 = scmp.eq.s32.totalorder %s19, 0
    %p124 = por %p122, %p123
    %p125 = scmp.ne.s32.totalorder %s113, %s114
    %p126 = scmp.eq.s32.totalorder %s20, 1
    %p127 = por %p125, %p126
    %p129 = scmp.ne.s32.totalorder %s114, %s128
    %p130 = scmp.eq.s32.totalorder %s20, 0
    %p131 = por %p129, %p130
    %s133 = sadd.s32 %s132, 1
    %p136 = scmp.eq.s32.totalorder %s14, 1
    %p137 = scmp.ne.s32.totalorder %s132, %s134
    %p138 = scmp.eq.s32.totalorder %s14, 0
    %p139 = por %p137, %p138
    %p140 = scmp.ne.s32.totalorder %s132, %s134
    %p141 = scmp.eq.s32.totalorder %s19, 1
    %p142 = por %p140, %p141
    %p143 = scmp.ne.s32.totalorder %s134, %s135
    %p144 = scmp.eq.s32.totalorder %s19, 0
    %p145 = por %p143, %p144
    %p146 = scmp.ne.s32.totalorder %s134, %s135
    %p147 = scmp.eq.s32.totalorder %s20, 1
    %p148 = por %p146, %p147
    %p150 = scmp.ne.s32.totalorder %s135, %s149
    %p151 = scmp.eq.s32.totalorder %s20, 0
    %p152 = por %p150, %p151
    %s154 = sadd.s32 %s153, 1
    %p157 = scmp.eq.s32.totalorder %s14, 1
    %p158 = scmp.ne.s32.totalorder %s153, %s155
    %p159 = scmp.eq.s32.totalorder %s14, 0
    %p160 = por %p158, %p159
    %p161 = scmp.ne.s32.totalorder %s153, %s155
    %p162 = scmp.eq.s32.totalorder %s19, 1
    %p163 = por %p161, %p162
    %p164 = scmp.ne.s32.totalorder %s155, %s156
    %p165 = scmp.eq.s32.totalorder %s19, 0
    %p166 = por %p164, %p165
    %p167 = scmp.ne.s32.totalorder %s155, %s156
    %p168 = scmp.eq.s32.totalorder %s20, 1
    %p169 = por %p167, %p168
    %p171 = scmp.ne.s32.totalorder %s156, %s170
    %p172 = scmp.eq.s32.totalorder %s20, 0
    %p173 = por %p171, %p172
    %s175 = sadd.s32 %s174, 1
    %p178 = scmp.eq.s32.totalorder %s14, 1
    %p179 = scmp.ne.s32.totalorder %s174, %s176
    %p180 = scmp.eq.s32.totalorder %s14, 0
    %p181 = por %p179, %p180
    %p182 = scmp.ne.s32.totalorder %s174, %s176
    %p183 = scmp.eq.s32.totalorder %s19, 1
    %p184 = por %p182, %p183
    %p185 = scmp.ne.s32.totalorder %s176, %s177
    %p186 = scmp.eq.s32.totalorder %s19, 0
    %p187 = por %p185, %p186
    %p188 = scmp.ne.s32.totalorder %s176, %s177
    %p189 = scmp.eq.s32.totalorder %s20, 1
    %p190 = por %p188, %p189
    %p192 = scmp.ne.s32.totalorder %s177, %s191
    %p193 = scmp.eq.s32.totalorder %s20, 0
    %p194 = por %p192, %p193
    %s195 = ssub.s32 %s14, %s21
    %p196 = scmp.eq.s32.totalorder %s195, 0
    %s198 = sadd.s32 %s197, 1
    %s199 = scalar_select %p196, %s197, %s198
    %p202 = pneg %p196
    %p203 = scmp.eq.s32.totalorder %s14, 1
    %p204 = por %p202, %p203
    %p205 = scmp.ne.s32.totalorder %s197, %s200
    %p206 = scmp.eq.s32.totalorder %s14, 0
    %p207 = por %p205, %p206
    %p208 = scmp.ne.s32.totalorder %s197, %s200
    %p209 = scmp.eq.s32.totalorder %s19, 1
    %p210 = por %p208, %p209
    %p211 = scmp.ne.s32.totalorder %s200, %s201
    %p212 = scmp.eq.s32.totalorder %s19, 0
    %p213 = por %p211, %p212
    %p214 = scmp.ne.s32.totalorder %s200, %s201
    %p215 = scmp.eq.s32.totalorder %s20, 1
    %p216 = por %p214, %p215
    %p218 = scmp.ne.s32.totalorder %s201, %s217
    %p219 = scmp.eq.s32.totalorder %s20, 0
    %p220 = por %p218, %p219
    %p221 = scmp.le.s32.totalorder 1, %s14
    %p222 = scmp.lt.s32.totalorder %s14, 3
    %p223 = pnand %p221, %p222
    %p224 = pneg %p223
    // Predicated region
    $region9: #{forward.1} parent=5 // pred_check
      _
    $region10: #{forward.1} parent=5 // pred_check_branch
      %226 = sbr.rel (%p223) target = $region12
    $region11: #{forward.1} parent=5 // pred_region
      %s227 = ssub.s32 %s14, 1
      // Predicated region
      $region13: #{forward.1} parent=11 // pred_check
        %p228 = pneg %p61
      $region14: #{forward.1} parent=11 // pred_check_branch
        %230 = sbr.rel (%p228) target = $region16
      $region15: #{forward.1} parent=11 // pred_region
        _
      $region16: #{forward.1} parent=11 // pred_fallthru
        _
      // Predicated region
      $region17: #{forward.1} parent=11 // pred_check
        %p231 = pneg %p82
      $region18: #{forward.1} parent=11 // pred_check_branch
        %233 = sbr.rel (%p231) target = $region20
      $region19: #{forward.1} parent=11 // pred_region
        _
      $region20: #{forward.1} parent=11 // pred_fallthru
        _
      // Predicated region
      $region21: #{forward.1} parent=11 // pred_check
        %p234 = pneg %p103
      $region22: #{forward.1} parent=11 // pred_check_branch
        %236 = sbr.rel (%p234) target = $region24
      $region23: #{forward.1} parent=11 // pred_region
        _
      $region24: #{forward.1} parent=11 // pred_fallthru
        _
      // Predicated region
      $region25: #{forward.1} parent=11 // pred_check
        %p237 = pneg %p124
      $region26: #{forward.1} parent=11 // pred_check_branch
        %239 = sbr.rel (%p237) target = $region28
      $region27: #{forward.1} parent=11 // pred_region
        _
      $region28: #{forward.1} parent=11 // pred_fallthru
        _
      // Predicated region
      $region29: #{forward.1} parent=11 // pred_check
        %p240 = pneg %p145
      $region30: #{forward.1} parent=11 // pred_check_branch
        %242 = sbr.rel (%p240) target = $region32
      $region31: #{forward.1} parent=11 // pred_region
        _
      $region32: #{forward.1} parent=11 // pred_fallthru
        _
      // Predicated region
      $region33: #{forward.1} parent=11 // pred_check
        %p243 = pneg %p166
      $region34: #{forward.1} parent=11 // pred_check_branch
        %245 = sbr.rel (%p243) target = $region36
      $region35: #{forward.1} parent=11 // pred_region
        _
      $region36: #{forward.1} parent=11 // pred_fallthru
        _
      // Predicated region
      $region37: #{forward.1} parent=11 // pred_check
        %p246 = pneg %p187
      $region38: #{forward.1} parent=11 // pred_check_branch
        %248 = sbr.rel (%p246) target = $region40
      $region39: #{forward.1} parent=11 // pred_region
        _
      $region40: #{forward.1} parent=11 // pred_fallthru
        _
    $region12: #{forward.1} parent=5 // pred_fallthru
      _
    %p249 = scmp.lt.s32.totalorder %s14, 2
    // Predicated region
    $region41: #{forward.1} parent=5 // pred_check
      %p250 = pneg %p249
    $region42: #{forward.1} parent=5 // pred_check_branch
      %252 = sbr.rel (%p250) target = $region44
    $region43: #{forward.1} parent=5 // pred_region
      // Predicated region
      $region45: #{forward.1} parent=43 // pred_check
        %p253 = pneg %p34
      $region46: #{forward.1} parent=43 // pred_check_branch
        %255 = sbr.rel (%p253) target = $region48
      $region47: #{forward.1} parent=43 // pred_region
        %p256 = scmp.lt.s32.totalorder %s14, 1
        %s257 = scalar_select %p256, %s14, 1
        %s258 = smul.addr %s257, 3
        %s259 = smul.addr %s258, 8
        %s260 = scalar_lea.vmem %s0, %s259
      $region48: #{forward.1} parent=43 // pred_fallthru
        _
    $region44: #{forward.1} parent=5 // pred_fallthru
      _
    %p261 = scmp.le.s32.totalorder 1, %s14
    %p262 = scmp.lt.s32.totalorder %s14, 3
    %p263 = pnand %p261, %p262
    %p264 = pneg %p263
    // Predicated region
    $region49: #{forward.1} parent=5 // pred_check
      _
    $region50: #{forward.1} parent=5 // pred_check_branch
      %266 = sbr.rel (%p263) target = $region52
    $region51: #{forward.1} parent=5 // pred_region
      %s267 = ssub.s32 %s14, 1
      %p268 = scmp.lt.s32.totalorder %s19, 1
      %s269 = scalar_select %p268, %s19, 1
      %s270 = smul.addr %s269, 3
      %s271 = smul.addr %s270, 8
      %s272 = scalar_lea.vmem %s0, %s271
      %p273 = pneg %p40
      %p274 = pneg %p37
      %p275 = pneg %p61
      %p276 = pneg %p58
      %p277 = pneg %p82
      %p278 = pneg %p79
      %p279 = pneg %p103
      %p280 = pneg %p100
      %p281 = pneg %p124
      %p282 = pneg %p121
      %p283 = pneg %p145
      %p284 = pneg %p142
      %p285 = pneg %p166
      %p286 = pneg %p163
      %p287 = pneg %p187
      %p288 = pneg %p184
      %p289 = pneg %p213
      %p290 = pneg %p210
      %p291 = scmp.lt.s32.totalorder %s19, 1
      %s292 = scalar_select %p291, %s19, 1
      %s293 = scalar_lea.vmem %s8, %s292
      %p294 = scmp.lt.s32.totalorder %s19, 1
      %s295 = scalar_select %p294, %s19, 1
      %s296 = smul.addr %s295, 3
      %s297 = smul.addr %s296, 8
      %s298 = scalar_lea.vmem %s0, %s297
      %p299 = scmp.lt.s32.totalorder %s19, 1
      %s300 = scalar_select %p299, %s19, 1
      %s301 = scalar_lea.vmem %s8, %s300
      %vm302 = vcmask 516096
      %303 = vst.msk [vmem:[#allocation5] sm:$0x1] %vm302, 0.0
      %304 = vst.msk [vmem:[#allocation5 + $0x9] sm:$0x1] %vm302, 0.0
      %305 = vst.msk [vmem:[#allocation6] sm:$0x1] %vm302, 0.0
      %306 = vst.msk [vmem:[#allocation6 + $0x5] sm:$0x1] %vm302, 0.0
      %v307 = vld [vmem:[%s298] ss:$2 sm:$0xff]
      %vm308 = vcmask 392192
      %309 = vst.msk [vmem:[#allocation2] sm:$0xff] %vm308, %v307
      %s310 = scalar_lea.vmem %s298, 1
      %v311 = vld [vmem:[%s310] ss:$2 sm:$0xff]
      %313 = vrot.lane.b32.xlu0 %v311, 48
      %v314 = vpop.permute.xlu0 %313
      %vm316 = vcmask 785792
      %317 = vst.msk [vmem:[#allocation2] sm:$0xff] %vm316, %v314
      %s318 = scalar_lea.vmem %s298, 2
      %v319 = vld [vmem:[%s318] ss:$2 sm:$0xff]
      %321 = vrot.lane.b32.xlu0 %v319, 96
      %v322 = vpop.permute.xlu0 %321
      %vm324 = vcmask 1048320
      %325 = vst.msk [vmem:[#allocation2] sm:$0xff] %vm324, %v322
      %vm326 = vcmask 130048
      %327 = vst.msk [vmem:[#allocation2 + $0x8] sm:$0xff] %vm326, %v322
      %s328 = scalar_lea.vmem %s298, 3
      %v329 = vld [vmem:[%s328] ss:$2 sm:$0xff]
      %331 = vrot.lane.b32.xlu0 %v329, 16
      %v332 = vpop.permute.xlu0 %331
      %vm334 = vcmask 523392
      %335 = vst.msk [vmem:[#allocation2 + $0x8] sm:$0xff] %vm334, %v332
      %v336 = vld [vmem:[#allocation2] sm:$0xff]
      %v337 = vld [vmem:[#allocation2 + $0x8] sm:$0xff]
      %v338 = vld [vmem:[%s1] sm:$0xff]
      %v339 = vld [vmem:[%s1 + $0x8] sm:$0xff]
      %v340 = vld [vmem:[%s1 + $0x10] sm:$0xff]
      %v341 = vld [vmem:[%s1 + $0x18] sm:$0xff]
      %v342 = vld [vmem:[%s1 + $0x20] sm:$0xff]
      %v343 = vld [vmem:[%s1 + $0x28] sm:$0xff]
      %v344 = vld [vmem:[%s1 + $0x30] sm:$0xff]
      %v345 = vld [vmem:[%s1 + $0x38] sm:$0xff]
      %v346 = vld [vmem:[%s1 + $0x40] sm:$0xff]
      %v347 = vld [vmem:[%s1 + $0x48] sm:$0xff]
      %v348 = vld [vmem:[%s1 + $0x50] sm:$0xff]
      %v349 = vld [vmem:[%s1 + $0x58] sm:$0xff]
      %v350 = vld [vmem:[%s1 + $0x60] sm:$0xff]
      %v351 = vld [vmem:[%s1 + $0x68] sm:$0xff]
      %v352 = vld [vmem:[%s1 + $0x70] sm:$0xff]
      %v353 = vld [vmem:[%s1 + $0x78] sm:$0xff]
      %v354 = vld [vmem:[%s1 + $0x80] sm:$0xff]
      %v355 = vld [vmem:[%s1 + $0x88] sm:$0xff]
      %v356 = vld [vmem:[%s1 + $0x90] sm:$0xff]
      %v357 = vld [vmem:[%s1 + $0x98] sm:$0xff]
      %v358 = vld [vmem:[%s1 + $0xa0] sm:$0xff]
      %v359 = vld [vmem:[%s1 + $0xa8] sm:$0xff]
      %v360 = vld [vmem:[%s1 + $0xb0] sm:$0xff]
      %v361 = vld [vmem:[%s1 + $0xb8] sm:$0xff]
      %v362 = vld [vmem:[%s2] sm:$0x1]
      %v364 = vperm.slane %v362, 0
      %vm366 = vcmask 523264
      %v368 = vsel %vm366, %v337, 0
      %370 = vmatpush.msra.mxu0 %v353
      %371 = vmatpush.msra.mxu0 %v352
      %372 = vmatpush.msra.mxu0 %v351
      %373 = vmatpush.msra.mxu0 %v350
      %374 = vmatpush.msra.mxu0 %v349
      %375 = vmatpush.msra.mxu0 %v348
      %376 = vmatpush.msra.mxu0 %v347
      %377 = vmatpush.msra.mxu0 %v346
      %378 = vmatpush.msra.mxu0 %v345
      %379 = vmatpush.msra.mxu0 %v344
      %380 = vmatpush.msra.mxu0 %v343
      %381 = vmatpush.msra.mxu0 %v342
      %382 = vmatpush.msra.mxu0 %v341
      %383 = vmatpush.msra.mxu0 %v340
      %384 = vmatpush.msra.mxu0 %v339
      %385 = vmatpush.msra.mxu0 %v338
      %386 = vmatmul.f32.gmra.mxu0 %v336
      %v387 = vpop.f32.mrf.mxu0
      %v388 = vadd.f32 %v364, %v387
      %389 = vdwg.mxu0
      %390 = vmatpush.msra.mxu0 0.0
      %391 = vmatpush.msra.mxu0 0.0
      %392 = vmatpush.msra.mxu0 0.0
      %393 = vmatpush.msra.mxu0 0.0
      %394 = vmatpush.msra.mxu0 0.0
      %395 = vmatpush.msra.mxu0 0.0
      %396 = vmatpush.msra.mxu0 0.0
      %397 = vmatpush.msra.mxu0 0.0
      %398 = vmatpush.msra.mxu0 %v361
      %399 = vmatpush.msra.mxu0 %v360
      %400 = vmatpush.msra.mxu0 %v359
      %401 = vmatpush.msra.mxu0 %v358
      %402 = vmatpush.msra.mxu0 %v357
      %403 = vmatpush.msra.mxu0 %v356
      %404 = vmatpush.msra.mxu0 %v355
      %405 = vmatpush.msra.mxu0 %v354
      %406 = vmatmul.f32.gmra.mxu0 %v368
      %v407 = vpop.f32.mrf.mxu0
      %v408 = vadd.f32 %v388, %v407
      %409 = vdwg.mxu0
      %vm410 = vcmp.ge.f32.partialorder %v408, 0.0
      %v411 = vmul.f32 %v408, 0.01
      %v412 = vsel %vm410, %v408, %v411
      %413 = vst.msk [vmem:[#allocation5 + $0x1] sm:$0xff] %vm366, %v412
      %v414 = vld [vmem:[#allocation5] ss:$2 sm:$0xf]
      %vm415 = vcmask 519168
      %416 = vst.msk [vmem:[#allocation3] sm:$0xf] %vm415, %v414
      %s417 = scalar_lea.vmem [#allocation5], 1
      %v418 = vld [vmem:[%s417] ss:$2 sm:$0xf]
      %420 = vrot.lane.b32.xlu0 %v418, 64
      %v421 = vpop.permute.xlu0 %420
      %vm423 = vcmask 1043968
      %424 = vst.msk [vmem:[#allocation3] sm:$0xf] %vm423, %v421
      %s425 = scalar_lea.vmem [#allocation5], 2
      %v426 = vld [vmem:[%s425] ss:$2 sm:$0xf]
      %427 = vst.msk [vmem:[#allocation3 + $0x4] sm:$0xf] %vm415, %v426
      %s428 = scalar_lea.vmem [#allocation5], 3
      %v429 = vld [vmem:[%s428] ss:$2 sm:$0xf]
      %431 = vrot.lane.b32.xlu0 %v429, 64
      %v432 = vpop.permute.xlu0 %431
      %434 = vst.msk [vmem:[#allocation3 + $0x4] sm:$0xf] %vm423, %v432
      %v435 = vld [vmem:[#allocation3] sm:$0xff]
      %v436 = vld [vmem:[%s3] sm:$0xff]
      %v437 = vld [vmem:[%s3 + $0x8] sm:$0xff]
      %v438 = vld [vmem:[%s3 + $0x10] sm:$0xff]
      %v439 = vld [vmem:[%s3 + $0x18] sm:$0xff]
      %v440 = vld [vmem:[%s3 + $0x20] sm:$0xff]
      %v441 = vld [vmem:[%s3 + $0x28] sm:$0xff]
      %v442 = vld [vmem:[%s3 + $0x30] sm:$0xff]
      %v443 = vld [vmem:[%s3 + $0x38] sm:$0xff]
      %v444 = vld [vmem:[%s3 + $0x40] sm:$0xff]
      %v445 = vld [vmem:[%s3 + $0x48] sm:$0xff]
      %v446 = vld [vmem:[%s3 + $0x50] sm:$0xff]
      %v447 = vld [vmem:[%s3 + $0x58] sm:$0xff]
      %v448 = vld [vmem:[%s3 + $0x60] sm:$0xff]
      %v449 = vld [vmem:[%s3 + $0x68] sm:$0xff]
      %v450 = vld [vmem:[%s3 + $0x70] sm:$0xff]
      %v451 = vld [vmem:[%s3 + $0x78] sm:$0xff]
      %v452 = vld [vmem:[%s3 + $0x80] sm:$0xff]
      %v453 = vld [vmem:[%s3 + $0x88] sm:$0xff]
      %v454 = vld [vmem:[%s3 + $0x90] sm:$0xff]
      %v455 = vld [vmem:[%s3 + $0x98] sm:$0xff]
      %v456 = vld [vmem:[%s3 + $0xa0] sm:$0xff]
      %v457 = vld [vmem:[%s3 + $0xa8] sm:$0xff]
      %v458 = vld [vmem:[%s3 + $0xb0] sm:$0xff]
      %v459 = vld [vmem:[%s3 + $0xb8] sm:$0xff]
      %v460 = vld [vmem:[%s3 + $0xc0] sm:$0xff]
      %v461 = vld [vmem:[%s3 + $0xc8] sm:$0xff]
      %v462 = vld [vmem:[%s3 + $0xd0] sm:$0xff]
      %v463 = vld [vmem:[%s3 + $0xd8] sm:$0xff]
      %v464 = vld [vmem:[%s3 + $0xe0] sm:$0xff]
      %v465 = vld [vmem:[%s3 + $0xe8] sm:$0xff]
      %v466 = vld [vmem:[%s3 + $0xf0] sm:$0xff]
      %v467 = vld [vmem:[%s3 + $0xf8] sm:$0xff]
      %v468 = vld [vmem:[%s4] sm:$0x1]
      %v470 = vperm.slane %v468, 0
      %473 = vst [vmem:[#allocation1] ss:$2 sm:$0xff] %v435
      %v474 = vld.sshfl [vmem:[#allocation1] sm:$0xff pattern:$0x75316420]
      %v475 = vld.sshfl [vmem:[#allocation1 + $0x8] sm:$0xff pattern:$0x75316420]
      %478 = vmatpush.msra.mxu0 %v451
      %479 = vmatpush.msra.mxu0 %v450
      %480 = vmatpush.msra.mxu0 %v449
      %481 = vmatpush.msra.mxu0 %v448
      %482 = vmatpush.msra.mxu0 %v447
      %483 = vmatpush.msra.mxu0 %v446
      %484 = vmatpush.msra.mxu0 %v445
      %485 = vmatpush.msra.mxu0 %v444
      %486 = vmatpush.msra.mxu0 %v443
      %487 = vmatpush.msra.mxu0 %v442
      %488 = vmatpush.msra.mxu0 %v441
      %489 = vmatpush.msra.mxu0 %v440
      %490 = vmatpush.msra.mxu0 %v439
      %491 = vmatpush.msra.mxu0 %v438
      %492 = vmatpush.msra.mxu0 %v437
      %493 = vmatpush.msra.mxu0 %v436
      %494 = vmatmul.f32.gmra.mxu0 %v474
      %v495 = vpop.f32.mrf.mxu0
      %v496 = vadd.f32 %v470, %v495
      %497 = vdwg.mxu0
      %498 = vmatpush.msra.mxu0 %v467
      %499 = vmatpush.msra.mxu0 %v466
      %500 = vmatpush.msra.mxu0 %v465
      %501 = vmatpush.msra.mxu0 %v464
      %502 = vmatpush.msra.mxu0 %v463
      %503 = vmatpush.msra.mxu0 %v462
      %504 = vmatpush.msra.mxu0 %v461
      %505 = vmatpush.msra.mxu0 %v460
      %506 = vmatpush.msra.mxu0 %v459
      %507 = vmatpush.msra.mxu0 %v458
      %508 = vmatpush.msra.mxu0 %v457
      %509 = vmatpush.msra.mxu0 %v456
      %510 = vmatpush.msra.mxu0 %v455
      %511 = vmatpush.msra.mxu0 %v454
      %512 = vmatpush.msra.mxu0 %v453
      %513 = vmatpush.msra.mxu0 %v452
      %514 = vmatmul.f32.gmra.mxu0 %v475
      %v515 = vpop.f32.mrf.mxu0
      %v516 = vadd.f32 %v496, %v515
      %517 = vdwg.mxu0
      %vm518 = vcmp.ge.f32.partialorder %v516, 0.0
      %v519 = vmul.f32 %v516, 0.01
      %v520 = vsel %vm518, %v516, %v519
      %521 = vst.msk [vmem:[#allocation6 + $0x1] sm:$0xf] %vm415, %v520
      %v522 = vld [vmem:[#allocation6] ss:$2 sm:$0x3]
      %vm523 = vcmask 517120
      %524 = vst.msk [vmem:[#allocation4] sm:$0x3] %vm523, %v522
      %s525 = scalar_lea.vmem [#allocation6], 1
      %v526 = vld [vmem:[%s525] ss:$2 sm:$0x3]
      %528 = vrot.lane.b32.xlu0 %v526, 64
      %v529 = vpop.permute.xlu0 %528
      %vm531 = vcmask 1041920
      %532 = vst.msk [vmem:[#allocation4] sm:$0x3] %vm531, %v529
      %s533 = scalar_lea.vmem [#allocation6], 2
      %v534 = vld [vmem:[%s533] ss:$2 sm:$0x3]
      %535 = vst.msk [vmem:[#allocation4 + $0x2] sm:$0x3] %vm523, %v534
      %s536 = scalar_lea.vmem [#allocation6], 3
      %v537 = vld [vmem:[%s536] ss:$2 sm:$0x3]
      %539 = vrot.lane.b32.xlu0 %v537, 64
      %v540 = vpop.permute.xlu0 %539
      %542 = vst.msk [vmem:[#allocation4 + $0x2] sm:$0x3] %vm531, %v540
      %v543 = vld [vmem:[#allocation4] sm:$0xf]
      %v544 = vld [vmem:[%s5] sm:$0xff]
      %v545 = vld [vmem:[%s5 + $0x8] sm:$0xff]
      %v546 = vld [vmem:[%s5 + $0x10] sm:$0xff]
      %v547 = vld [vmem:[%s5 + $0x18] sm:$0xff]
      %v548 = vld [vmem:[%s5 + $0x20] sm:$0xff]
      %v549 = vld [vmem:[%s5 + $0x28] sm:$0xff]
      %v550 = vld [vmem:[%s5 + $0x30] sm:$0xff]
      %v551 = vld [vmem:[%s5 + $0x38] sm:$0xff]
      %v552 = vld [vmem:[%s5 + $0x40] sm:$0xff]
      %v553 = vld [vmem:[%s5 + $0x48] sm:$0xff]
      %v554 = vld [vmem:[%s5 + $0x50] sm:$0xff]
      %v555 = vld [vmem:[%s5 + $0x58] sm:$0xff]
      %v556 = vld [vmem:[%s5 + $0x60] sm:$0xff]
      %v557 = vld [vmem:[%s5 + $0x68] sm:$0xff]
      %v558 = vld [vmem:[%s5 + $0x70] sm:$0xff]
      %v559 = vld [vmem:[%s5 + $0x78] sm:$0xff]
      %v560 = vld [vmem:[%s5 + $0x80] sm:$0xff]
      %v561 = vld [vmem:[%s5 + $0x88] sm:$0xff]
      %v562 = vld [vmem:[%s5 + $0x90] sm:$0xff]
      %v563 = vld [vmem:[%s5 + $0x98] sm:$0xff]
      %v564 = vld [vmem:[%s5 + $0xa0] sm:$0xff]
      %v565 = vld [vmem:[%s5 + $0xa8] sm:$0xff]
      %v566 = vld [vmem:[%s5 + $0xb0] sm:$0xff]
      %v567 = vld [vmem:[%s5 + $0xb8] sm:$0xff]
      %v568 = vld [vmem:[%s5 + $0xc0] sm:$0xff]
      %v569 = vld [vmem:[%s5 + $0xc8] sm:$0xff]
      %v570 = vld [vmem:[%s5 + $0xd0] sm:$0xff]
      %v571 = vld [vmem:[%s5 + $0xd8] sm:$0xff]
      %v572 = vld [vmem:[%s5 + $0xe0] sm:$0xff]
      %v573 = vld [vmem:[%s5 + $0xe8] sm:$0xff]
      %v574 = vld [vmem:[%s5 + $0xf0] sm:$0xff]
      %v575 = vld [vmem:[%s5 + $0xf8] sm:$0xff]
      %v576 = vld [vmem:[%s6] sm:$0x1]
      %v578 = vperm.slane %v576, 0
      %581 = vst [vmem:[#allocation1] ss:$4 sm:$0xff] %v543
      %v582 = vld.sshfl [vmem:[#allocation1] sm:$0xff pattern:$0x73625140]
      %v583 = vld.sshfl [vmem:[#allocation1 + $0x8] sm:$0xff pattern:$0x73625140]
      %586 = vmatpush.msra.mxu0 %v559
      %587 = vmatpush.msra.mxu0 %v558
      %588 = vmatpush.msra.mxu0 %v557
      %589 = vmatpush.msra.mxu0 %v556
      %590 = vmatpush.msra.mxu0 %v555
      %591 = vmatpush.msra.mxu0 %v554
      %592 = vmatpush.msra.mxu0 %v553
      %593 = vmatpush.msra.mxu0 %v552
      %594 = vmatpush.msra.mxu0 %v551
      %595 = vmatpush.msra.mxu0 %v550
      %596 = vmatpush.msra.mxu0 %v549
      %597 = vmatpush.msra.mxu0 %v548
      %598 = vmatpush.msra.mxu0 %v547
      %599 = vmatpush.msra.mxu0 %v546
      %600 = vmatpush.msra.mxu0 %v545
      %601 = vmatpush.msra.mxu0 %v544
      %602 = vmatmul.f32.gmra.mxu0 %v582
      %v603 = vpop.f32.mrf.mxu0
      %v604 = vadd.f32 %v578, %v603
      %605 = vdwg.mxu0
      %606 = vmatpush.msra.mxu0 %v575
      %607 = vmatpush.msra.mxu0 %v574
      %608 = vmatpush.msra.mxu0 %v573
      %609 = vmatpush.msra.mxu0 %v572
      %610 = vmatpush.msra.mxu0 %v571
      %611 = vmatpush.msra.mxu0 %v570
      %612 = vmatpush.msra.mxu0 %v569
      %613 = vmatpush.msra.mxu0 %v568
      %614 = vmatpush.msra.mxu0 %v567
      %615 = vmatpush.msra.mxu0 %v566
      %616 = vmatpush.msra.mxu0 %v565
      %617 = vmatpush.msra.mxu0 %v564
      %618 = vmatpush.msra.mxu0 %v563
      %619 = vmatpush.msra.mxu0 %v562
      %620 = vmatpush.msra.mxu0 %v561
      %621 = vmatpush.msra.mxu0 %v560
      %622 = vmatmul.f32.gmra.mxu0 %v583
      %v623 = vpop.f32.mrf.mxu0
      %v624 = vadd.f32 %v604, %v623
      %625 = vdwg.mxu0
      %vm626 = vcmp.ge.f32.partialorder %v624, 0.0
      %v627 = vmul.f32 %v624, 0.01
      %v628 = vsel %vm626, %v624, %v627
      %629 = vst.msk [vmem:[#allocation7] sm:$0x1] %vm302, %v628
      %631 = vrot.lane.b32.xlu0 %v628, 64
      %v632 = vpop.permute.xlu0 %631
      %vm634 = vcmask 1041921
      %635 = vst.msk [vmem:[#allocation7 - $0x1] sm:$0x2] %vm634, %v632
      %v636 = vld [vmem:[#allocation7] sm:$0x1]
      %v637 = vld [vmem:[%s7] sm:$0xff]
      %v638 = vld [vmem:[%s7 + $0x8] sm:$0xff]
      %v639 = vld [vmem:[%s7 + $0x10] sm:$0xff]
      %v640 = vld [vmem:[%s7 + $0x18] sm:$0xff]
      %v641 = vld [vmem:[%s7 + $0x20] sm:$0xff]
      %v642 = vld [vmem:[%s7 + $0x28] sm:$0xff]
      %v643 = vld [vmem:[%s7 + $0x30] sm:$0xff]
      %v644 = vld [vmem:[%s7 + $0x38] sm:$0xff]
      %v645 = vld [vmem:[%s7 + $0x40] sm:$0xff]
      %v646 = vld [vmem:[%s7 + $0x48] sm:$0xff]
      %v647 = vld [vmem:[%s7 + $0x50] sm:$0xff]
      %v648 = vld [vmem:[%s7 + $0x58] sm:$0xff]
      %v649 = vld [vmem:[%s7 + $0x60] sm:$0xff]
      %v650 = vld [vmem:[%s7 + $0x68] sm:$0xff]
      %v651 = vld [vmem:[%s7 + $0x70] sm:$0xff]
      %v652 = vld [vmem:[%s7 + $0x78] sm:$0xff]
      %653 = vmatpush.msra.mxu0 %v652
      %654 = vmatpush.msra.mxu0 %v651
      %655 = vmatpush.msra.mxu0 %v650
      %656 = vmatpush.msra.mxu0 %v649
      %657 = vmatpush.msra.mxu0 %v648
      %658 = vmatpush.msra.mxu0 %v647
      %659 = vmatpush.msra.mxu0 %v646
      %660 = vmatpush.msra.mxu0 %v645
      %661 = vmatpush.msra.mxu0 %v644
      %662 = vmatpush.msra.mxu0 %v643
      %663 = vmatpush.msra.mxu0 %v642
      %664 = vmatpush.msra.mxu0 %v641
      %665 = vmatpush.msra.mxu0 %v640
      %666 = vmatpush.msra.mxu0 %v639
      %667 = vmatpush.msra.mxu0 %v638
      %668 = vmatpush.msra.mxu0 %v637
      %669 = vmatmul.f32.gmra.mxu0 %v636
      %v670 = vpop.f32.mrf.mxu0
      %v671 = vadd.f32 0.0, %v670
      %672 = vdwg.mxu0
      %vm673 = vcmask 65568
      %v674 = vsel %vm673, %v671, -inf
      %675 = vmax.xlane.f32.xlu0 %v674
      %v676 = vpop.xlane.xlu0 %675
      %v677 = vsub.f32 %v671, %v676
      %v678 = vmul.f32 %v677, 1.442695
      %v679 = vpow.pop %v678
      %681 = vrot.lane.b32.xlu0 %v679, 124
      %v682 = vpop.permute.xlu0 %681
      %vm684 = vcmask 32768
      %v685 = vsel %vm684, %v682, 0.0
      %686 = vadd.xlane.f32.xlu0 %v685
      %v687 = vpop.xlane.xlu0 %686
      %v688 = vrcp.pop %v687
      %v689 = vmul.f32 %v687, %v688
      %v690 = vsub.f32 1.0, %v689
      %v691 = vmul.f32 %v688, %v690
      %v692 = vadd.f32 %v688, %v691
      %vm693 = vweird.f32 %v687
      %vm694 = vweird.f32 %v688
      %vm695 = vmor %vm693, %vm694
      %v696 = vsel %vm695, %v688, %v692
      %v697 = vand.u32 2147483647, %v687
      %vm698 = vcmp.eq.f32.partialorder %v697, 8.507059e+37
      %v699 = vand.u32 %v687, 2147483648
      %v700 = vor.u32 1.1754944e-38, %v699
      %v701 = vsel %vm698, %v700, %v696
      %v702 = vmul.f32 %v679, %v701
      %703 = vst [vmem:[%s301] sm:$0x1] %v671
      %704 = vst.msk [vmem:[%s301] sm:$0x1] %vm673, %v702
      %p705 = scmp.lt.s32.totalorder %s19, 1
      %s706 = scalar_select %p705, %s19, 1
      %s707 = scalar_lea.vmem %s8, %s706
      // Predicated region
      $region53: #{forward.1} parent=51 // pred_check
        %p708 = pneg %p210
      $region54: #{forward.1} parent=51 // pred_check_branch
        %710 = sbr.rel (%p708) target = $region56
      $region55: #{forward.1} parent=51 // pred_region
        _
      $region56: #{forward.1} parent=51 // pred_fallthru
        _
    $region52: #{forward.1} parent=5 // pred_fallthru
      _
    %p711 = scmp.le.s32.totalorder 2, %s14
    // Predicated region
    $region57: #{forward.1} parent=5 // pred_check
      %p712 = pneg %p711
    $region58: #{forward.1} parent=5 // pred_check_branch
      %714 = sbr.rel (%p712) target = $region60
    $region59: #{forward.1} parent=5 // pred_region
      %s715 = ssub.s32 %s14, 2
      // Predicated region
      $region61: #{forward.1} parent=59 // pred_check
        %p716 = pneg %p216
      $region62: #{forward.1} parent=59 // pred_check_branch
        %718 = sbr.rel (%p716) target = $region64
      $region63: #{forward.1} parent=59 // pred_region
        %p719 = scmp.lt.s32.totalorder %s20, 1
        %s720 = scalar_select %p719, %s20, 1
        %s721 = scalar_lea.vmem %s8, %s720
      $region64: #{forward.1} parent=59 // pred_fallthru
        _
    $region60: #{forward.1} parent=5 // pred_fallthru
      _
  $region6: #{forward.1} parent=0 // loop_footer
    %s18 = sadd.s32 1, %s14
  $region7: #{forward.1} parent=0 // loop_footer_branch
    %13 = sbr.rel target = $region3
  $region8: #{forward.1} parent=0 // loop_exit
    _

</llo_original>
